<compile_context>
chip_gen: v5e
topology: v5e:2x2
jax: 0.10.0
libtpu: 0.0.40
codegen_flags: <defaults>
</compile_context>

<pallas_src>
import functools

import jax
import jax.numpy as jnp
from jax.experimental import pallas as pl
from jax.experimental.pallas import tpu as pltpu


def _dice_partials_kernel(pred_ref, tgt_ref, inter_ref, union_ref, *,
                          num_classes, tile_hw):
    t = pl.program_id(1)

    @pl.when(t == 0)
    def _():
        inter_ref[...] = jnp.zeros_like(inter_ref)
        union_ref[...] = jnp.zeros_like(union_ref)

    p = pred_ref[0].astype(jnp.float32)       # [C, TILE_HW] logits, f32 in-reg
    lab = tgt_ref[0].astype(jnp.int32)        # [1, TILE_HW] labels

    # numerically-stable softmax over the channel (sublane) axis
    m = jnp.max(p, axis=0, keepdims=True)
    e = jnp.exp(p - m)
    inv = pl.reciprocal(jnp.sum(e, axis=0, keepdims=True), approx=False)
    sm = e * inv                              # [C, TILE_HW]

    # on-the-fly "one-hot": channel iota vs broadcast labels, never stored as
    # a separate float [C, HW] tensor in HBM.
    ch = jax.lax.broadcasted_iota(jnp.int32, (num_classes, tile_hw), 0)
    hit = (ch == lab).astype(jnp.float32)     # [C, TILE_HW]

    # Two lane reductions per tile: intersection, and the fused union term
    # sum(sm) + sum(onehot) == sum(sm + onehot).
    inter_p = jnp.sum(sm * hit, axis=1, keepdims=True)    # [C, 1]
    union_p = jnp.sum(sm + hit, axis=1, keepdims=True)    # [C, 1]

    inter_ref[...] += inter_p[None]           # [1, C, 1]
    union_ref[...] += union_p[None]


def _pick_tile_hw(hw, num_classes):
    """Largest multiple of 128 dividing hw, bounded by a VMEM/vreg budget."""
    # Keep C * tile_hw <= 256K f32 elements so the ~dozen live elementwise
    # temporaries stay around 1 MiB each; absolute lane cap of 64K.
    budget = max(128, (256 * 1024) // max(num_classes, 1))
    cap = min(hw, budget, 64 * 1024)
    t = max(128, (cap // 128) * 128)
    while t > 128 and hw % t != 0:
        t -= 128
    return t


def dice_loss(pred, target, smooth=1.0):
    """pred: [B, C, H, W] float, target: [B, H, W] int -> scalar loss."""
    B, C, H, W = pred.shape
    HW = H * W
    assert HW % 128 == 0, "H*W must be a multiple of 128 for lane tiling"

    tile_hw = _pick_tile_hw(HW, C)
    n_hw = HW // tile_hw

    # Keep pred's storage dtype (bf16 stays bf16 in HBM); compute in f32.
    if pred.dtype not in (jnp.bfloat16, jnp.float32):
        pred = pred.astype(jnp.float32)
    pred_r = pred.reshape(B, C, HW)

    # Small class count -> 1 byte/pixel of target HBM traffic instead of 4.
    tgt_dtype = jnp.int8 if C <= 127 else jnp.int32
    tgt_r = target.astype(tgt_dtype).reshape(B, 1, HW)

    kernel = functools.partial(
        _dice_partials_kernel, num_classes=C, tile_hw=tile_hw)

    # VMEM budget: double-buffered input blocks + ~12 live f32 [C, tile_hw]
    # temporaries + headroom; clamped so it is safe on v7x (64 MiB physical).
    pred_bytes = C * tile_hw * jnp.dtype(pred_r.dtype).itemsize
    tgt_bytes = tile_hw * jnp.dtype(tgt_dtype).itemsize
    vmem_est = 2 * (pred_bytes + tgt_bytes) + 12 * C * tile_hw * 4 + (2 << 20)
    vmem_limit = int(min(max(vmem_est, 24 << 20), 48 << 20))

    inter, union = pl.pallas_call(
        kernel,
        out_shape=(jax.ShapeDtypeStruct((B, C, 1), jnp.float32),
                   jax.ShapeDtypeStruct((B, C, 1), jnp.float32)),
        grid_spec=pltpu.PrefetchScalarGridSpec(
            num_scalar_prefetch=0,
            grid=(B, n_hw),
            in_specs=[
                pl.BlockSpec((1, C, tile_hw), lambda b, t: (b, 0, t)),
                pl.BlockSpec((1, 1, tile_hw), lambda b, t: (b, 0, t)),
            ],
            out_specs=[
                pl.BlockSpec((1, C, 1), lambda b, t: (b, 0, 0)),
                pl.BlockSpec((1, C, 1), lambda b, t: (b, 0, 0)),
            ],
        ),
        compiler_params=pltpu.CompilerParams(
            dimension_semantics=("parallel", "arbitrary"),
            vmem_limit_bytes=vmem_limit),
    )(pred_r, tgt_r)

    inter = inter[:, :, 0]                    # [B, C]
    union = union[:, :, 0]                    # [B, C]
    dice = (2.0 * inter + float(smooth)) / (union + float(smooth))
    return 1.0 - jnp.mean(dice)


def dice_loss_ref(pred, target, smooth=1.0):
    """Pure-JAX reference matching the PyTorch module."""
    sm = jax.nn.softmax(pred.astype(jnp.float32), axis=1)
    onehot = jax.nn.one_hot(target, pred.shape[1], dtype=jnp.float32)
    onehot = jnp.transpose(onehot, (0, 3, 1, 2))
    inter = jnp.sum(sm * onehot, axis=(2, 3))
    union = jnp.sum(sm, axis=(2, 3)) + jnp.sum(onehot, axis=(2, 3))
    dice = (2.0 * inter + smooth) / (union + smooth)
    return 1.0 - jnp.mean(dice)


if __name__ == "__main__":
    key = jax.random.PRNGKey(0)
    k1, k2 = jax.random.split(key)

    B, C, H, W = 2, 4, 16, 16
    pred = jax.random.normal(k1, (B, C, H, W), dtype=jnp.float32)
    target = jax.random.randint(k2, (B, H, W), 0, C, dtype=jnp.int32)

    loss = dice_loss(pred, target, smooth=1.0)
    jax.block_until_ready(loss)

    ref = dice_loss_ref(pred, target, smooth=1.0)
    assert jnp.allclose(loss, ref, atol=1e-5, rtol=1e-5), (loss, ref)

    print("KERNEL_OK")
</pallas_src>

<mosaic_0001>
module attributes {stable_mosaic.version = 11 : i64} {
  func.func @_dice_partials_kernel(%arg0: i32, %arg1: i32, %arg2: memref<1x4x256xf32, #tpu.memory_space<vmem>>, %arg3: memref<1x1x256xi8, #tpu.memory_space<vmem>>, %arg4: memref<1x4x1xf32, #tpu.memory_space<vmem>>, %arg5: memref<1x4x1xf32, #tpu.memory_space<vmem>>) attributes {dimension_semantics = [#tpu.dimension_semantics<parallel>, #tpu.dimension_semantics<arbitrary>], iteration_bounds = array<i64: 2, 1>, scalar_prefetch = 0 : i64, scratch_operands = 0 : i64, tpu.core_type = #tpu.core_type<tc>, window_params = [{transform_indices = @transform_0, window_bounds = array<i64: 1, 4, 256>}, {transform_indices = @transform_1, window_bounds = array<i64: 1, 1, 256>}, {transform_indices = @transform_2, window_bounds = array<i64: 1, 4, 1>}, {transform_indices = @transform_3, window_bounds = array<i64: 1, 4, 1>}]} {
    %c0_i32 = arith.constant 0 : i32
    %0 = arith.cmpi eq, %arg1, %c0_i32 : i32
    %1 = arith.extui %0 : i1 to i32
    %c0_i32_0 = arith.constant 0 : i32
    %2 = arith.cmpi ne, %1, %c0_i32_0 : i32
    scf.if %2 {
      %cst_21 = arith.constant 0.000000e+00 : f32
      %37 = vector.broadcast %cst_21 : f32 to vector<1x4x1xf32>
      %c0_22 = arith.constant 0 : index
      %c0_23 = arith.constant 0 : index
      %c0_24 = arith.constant 0 : index
      %38 = vector.load %arg4[%c0_22, %c0_23, %c0_24] : memref<1x4x1xf32, #tpu.memory_space<vmem>>, vector<1x4x1xf32>
      tpu.vector_store %arg4[%c0_22, %c0_23, %c0_24], %37 {strides = array<i32>} : memref<1x4x1xf32, #tpu.memory_space<vmem>>, vector<1x4x1xf32>,
      %cst_25 = arith.constant 0.000000e+00 : f32
      %39 = vector.broadcast %cst_25 : f32 to vector<1x4x1xf32>
      %c0_26 = arith.constant 0 : index
      %c0_27 = arith.constant 0 : index
      %c0_28 = arith.constant 0 : index
      %40 = vector.load %arg5[%c0_26, %c0_27, %c0_28] : memref<1x4x1xf32, #tpu.memory_space<vmem>>, vector<1x4x1xf32>
      tpu.vector_store %arg5[%c0_26, %c0_27, %c0_28], %39 {strides = array<i32>} : memref<1x4x1xf32, #tpu.memory_space<vmem>>, vector<1x4x1xf32>,
    } else {
    }
    %c0 = arith.constant 0 : index
    %c0_1 = arith.constant 0 : index
    %c0_2 = arith.constant 0 : index
    %3 = vector.load %arg2[%c0, %c0_1, %c0_2] : memref<1x4x256xf32, #tpu.memory_space<vmem>>, vector<1x4x256xf32>
    %4 = vector.shape_cast %3 : vector<1x4x256xf32> to vector<4x256xf32>
    %c0_3 = arith.constant 0 : index
    %c0_4 = arith.constant 0 : index
    %c0_5 = arith.constant 0 : index
    %5 = vector.load %arg3[%c0_3, %c0_4, %c0_5] : memref<1x1x256xi8, #tpu.memory_space<vmem>>, vector<1x1x256xi8>
    %6 = vector.shape_cast %5 : vector<1x1x256xi8> to vector<1x256xi8>
    %7 = arith.extsi %6 : vector<1x256xi8> to vector<1x256xi32>
    %cst = arith.constant dense<0xFF800000> : vector<256xf32>
    %8 = vector.multi_reduction <maximumf>, %4, %cst [0] : vector<4x256xf32> to vector<256xf32>
    %9 = vector.shape_cast %8 : vector<256xf32> to vector<1x256xf32>
    %10 = vector.broadcast %9 : vector<1x256xf32> to vector<4x256xf32>
    %11 = arith.subf %4, %10 : vector<4x256xf32>
    %12 = math.exp %11 : vector<4x256xf32>
    %cst_6 = arith.constant dense<0.000000e+00> : vector<256xf32>
    %13 = vector.multi_reduction <add>, %12, %cst_6 [0] : vector<4x256xf32> to vector<256xf32>
    %14 = vector.shape_cast %13 : vector<256xf32> to vector<1x256xf32>
    %15 = tpu.reciprocal %14 : vector<1x256xf32> -> vector<1x256xf32>
    %16 = vector.broadcast %15 : vector<1x256xf32> to vector<4x256xf32>
    %17 = arith.mulf %12, %16 : vector<4x256xf32>
    %18 = tpu.iota {dimensions = array<i32: 0>} : vector<4x256xi32>
    %19 = vector.broadcast %7 : vector<1x256xi32> to vector<4x256xi32>
    %20 = arith.cmpi eq, %18, %19 : vector<4x256xi32>
    %21 = arith.extui %20 : vector<4x256xi1> to vector<4x256xi32>
    %22 = arith.sitofp %21 : vector<4x256xi32> to vector<4x256xf32>
    %23 = arith.mulf %17, %22 : vector<4x256xf32>
    %cst_7 = arith.constant dense<0.000000e+00> : vector<4xf32>
    %24 = vector.multi_reduction <add>, %23, %cst_7 [1] : vector<4x256xf32> to vector<4xf32>
    %25 = vector.shape_cast %24 : vector<4xf32> to vector<4x1xf32>
    %26 = arith.addf %17, %22 : vector<4x256xf32>
    %cst_8 = arith.constant dense<0.000000e+00> : vector<4xf32>
    %27 = vector.multi_reduction <add>, %26, %cst_8 [1] : vector<4x256xf32> to vector<4xf32>
    %28 = vector.shape_cast %27 : vector<4xf32> to vector<4x1xf32>
    %c0_9 = arith.constant 0 : index
    %c0_10 = arith.constant 0 : index
    %c0_11 = arith.constant 0 : index
    %29 = vector.load %arg4[%c0_9, %c0_10, %c0_11] : memref<1x4x1xf32, #tpu.memory_space<vmem>>, vector<1x4x1xf32>
    %30 = vector.shape_cast %25 : vector<4x1xf32> to vector<1x4x1xf32>
    %31 = arith.addf %29, %30 : vector<1x4x1xf32>
    %c0_12 = arith.constant 0 : index
    %c0_13 = arith.constant 0 : index
    %c0_14 = arith.constant 0 : index
    %32 = vector.load %arg4[%c0_12, %c0_13, %c0_14] : memref<1x4x1xf32, #tpu.memory_space<vmem>>, vector<1x4x1xf32>
    tpu.vector_store %arg4[%c0_12, %c0_13, %c0_14], %31 {strides = array<i32>} : memref<1x4x1xf32, #tpu.memory_space<vmem>>, vector<1x4x1xf32>,
    %c0_15 = arith.constant 0 : index
    %c0_16 = arith.constant 0 : index
    %c0_17 = arith.constant 0 : index
    %33 = vector.load %arg5[%c0_15, %c0_16, %c0_17] : memref<1x4x1xf32, #tpu.memory_space<vmem>>, vector<1x4x1xf32>
    %34 = vector.shape_cast %28 : vector<4x1xf32> to vector<1x4x1xf32>
    %35 = arith.addf %33, %34 : vector<1x4x1xf32>
    %c0_18 = arith.constant 0 : index
    %c0_19 = arith.constant 0 : index
    %c0_20 = arith.constant 0 : index
    %36 = vector.load %arg5[%c0_18, %c0_19, %c0_20] : memref<1x4x1xf32, #tpu.memory_space<vmem>>, vector<1x4x1xf32>
    tpu.vector_store %arg5[%c0_18, %c0_19, %c0_20], %35 {strides = array<i32>} : memref<1x4x1xf32, #tpu.memory_space<vmem>>, vector<1x4x1xf32>,
    return
  }
  func.func @transform_0(%arg0: i32, %arg1: i32) -> (i32, i32, i32) {
    %c0_i32 = arith.constant 0 : i32
    %c0_i32_0 = arith.constant 0 : i32
    return %arg0, %c0_i32, %arg1 : i32, i32, i32
  }
  func.func @transform_1(%arg0: i32, %arg1: i32) -> (i32, i32, i32) {
    %c0_i32 = arith.constant 0 : i32
    %c0_i32_0 = arith.constant 0 : i32
    return %arg0, %c0_i32, %arg1 : i32, i32, i32
  }
  func.func @transform_2(%arg0: i32, %arg1: i32) -> (i32, i32, i32) {
    %c0_i32 = arith.constant 0 : i32
    %c0_i32_0 = arith.constant 0 : i32
    %c0_i32_1 = arith.constant 0 : i32
    return %arg0, %c0_i32, %c0_i32_0 : i32, i32, i32
  }
  func.func @transform_3(%arg0: i32, %arg1: i32) -> (i32, i32, i32) {
    %c0_i32 = arith.constant 0 : i32
    %c0_i32_0 = arith.constant 0 : i32
    %c0_i32_1 = arith.constant 0 : i32
    return %arg0, %c0_i32, %c0_i32_0 : i32, i32, i32
  }
}

</mosaic_0001>

<llo_original>
// kernel: tpu_custom_call.1
$region0: #{tpu_custom_call.1}
  #allocation0 [shape = 'u32[]', space=smem, size = 0x4, offset = 0x4, fixed_abs, tag = 'smem constant byte address 0x4 - core index']
  #allocation1 [shape = 'u32[72,128]{1,0:T(1,128)}', space=vmem, size = 0x9000, scoped, tag = 'internal scratch']
  %s0 = inlined_call_operand.hbm [shape: f32[2,4,256], index: 0, kind: input, shape index: {}]
  %s1 = inlined_call_operand.vmem [shape: s8[2,1,256], index: 1, kind: input, shape index: {}]
  %s2 = inlined_call_operand.vmem [shape: f32[2,4,1], index: 2, kind: output, shape index: {0}]
  %s3 = inlined_call_operand.vmem [shape: f32[2,4,1], index: 3, kind: output, shape index: {1}]
  %4 = xla_tuple %s2, %s3
  %s5 = sld [smem:[#allocation0]]
  $region57: #{tpu_custom_call.1} parent=0
    _
  %s7 = ssub.s32 1, %s5
  %s8 = scalar_select 0, %s7, %s5
  $region1: #{tpu_custom_call.1} parent=0
    #allocation2 [shape = 'u8[8192]{0}', space=vmem, size = 0x2000, scoped, tag = 'input window, operand 0']
    #allocation3 [shape = 's32[2]{0}', space=sflag, size = 0x8, scoped, tag = 'scoped memory for tpu_custom_call.1']
    %9 = vsyncpa [#allocation3], 0
    %s10 = scalar_lea.sflag [#allocation3], 1
    %11 = vsyncpa %s10, 0
    loop: start=0, step=1, limit=4
    $region2: #{tpu_custom_call.1} parent=1 // loop_pre_header
      _
    $region3: #{tpu_custom_call.1} parent=1 // loop_header
      %s13 = sphi 0, %s17
      %p14 = scmp.ge.s32.totalorder %s13, 4
      %s20 = sphi 0, %s32
      %s21 = sphi 0, %s28
      %s22 = sphi 0, %s20
      %s23 = sphi 0, %s21
      %s24 = sphi 0, %s22
      %s25 = sphi 0, %s23
      %s37 = sphi 0, %s39
      %s40 = sphi 0, %s37
      %s41 = sphi 0, %s40
      %s57 = sphi 0, %s41
      %s65 = sphi 0, %s67
      %s68 = sphi 0, %s65
      %s69 = sphi 0, %s68
      %s85 = sphi 0, %s69
      %s91 = sphi 0, %s93
      %s94 = sphi 0, %s91
      %s95 = sphi 0, %s94
      %s111 = sphi 0, %s95
      %s117 = sphi 0, %s119
      %s120 = sphi 0, %s117
      %s121 = sphi 0, %s120
      %s137 = sphi 0, %s121
    $region4: #{tpu_custom_call.1} parent=1 // loop_header_branch
      %16 = sbr.rel (%p14) target = $region8
    $region5: #{tpu_custom_call.1} parent=1 // loop_body
      %s18 = ssub.s32 %s13, 1
      %s19 = ssub.s32 %s13, 2
      %s26 = sadd.s32 1, %s21
      %p27 = scmp.ge.s32.totalorder %s26, 1
      %s28 = scalar_select %p27, 0, %s26
      %s29 = sadd.s32 1, %s20
      %s30 = scalar_select %p27, %s29, %s20
      %p31 = scmp.ge.s32.totalorder %s30, 2
      %s32 = scalar_select %p31, 0, %s30
      %s33 = ssub.s32 %s20, %s32
      %s34 = ssub.s32 %s21, %s28
      %s35 = sor.u32 %s33, %s34
      %p36 = scmp.eq.s32.totalorder %s35, 0
      %s38 = sadd.s32 %s37, 1
      %s39 = scalar_select %p36, %s37, %s38
      %p42 = pneg %p36
      %p43 = scmp.eq.s32.totalorder %s13, 1
      %p44 = por %p42, %p43
      %p45 = scmp.ne.s32.totalorder %s37, %s40
      %p46 = scmp.eq.s32.totalorder %s13, 0
      %p47 = por %p45, %p46
      %p48 = scmp.ne.s32.totalorder %s37, %s40
      %p49 = scmp.eq.s32.totalorder %s18, 1
      %p50 = por %p48, %p49
      %p51 = scmp.ne.s32.totalorder %s40, %s41
      %p52 = scmp.eq.s32.totalorder %s18, 0
      %p53 = por %p51, %p52
      %p54 = scmp.ne.s32.totalorder %s40, %s41
      %p55 = scmp.eq.s32.totalorder %s19, 1
      %p56 = por %p54, %p55
      %p58 = scmp.ne.s32.totalorder %s41, %s57
      %p59 = scmp.eq.s32.totalorder %s19, 0
      %p60 = por %p58, %p59
      %s61 = ssub.s32 %s20, %s32
      %s62 = ssub.s32 %s21, %s28
      %s63 = sor.u32 %s61, %s62
      %p64 = scmp.eq.s32.totalorder %s63, 0
      %s66 = sadd.s32 %s65, 1
      %s67 = scalar_select %p64, %s65, %s66
      %p70 = pneg %p64
      %p71 = scmp.eq.s32.totalorder %s13, 1
      %p72 = por %p70, %p71
      %p73 = scmp.ne.s32.totalorder %s65, %s68
      %p74 = scmp.eq.s32.totalorder %s13, 0
      %p75 = por %p73, %p74
      %p76 = scmp.ne.s32.totalorder %s65, %s68
      %p77 = scmp.eq.s32.totalorder %s18, 1
      %p78 = por %p76, %p77
      %p79 = scmp.ne.s32.totalorder %s68, %s69
      %p80 = scmp.eq.s32.totalorder %s18, 0
      %p81 = por %p79, %p80
      %p82 = scmp.ne.s32.totalorder %s68, %s69
      %p83 = scmp.eq.s32.totalorder %s19, 1
      %p84 = por %p82, %p83
      %p86 = scmp.ne.s32.totalorder %s69, %s85
      %p87 = scmp.eq.s32.totalorder %s19, 0
      %p88 = por %p86, %p87
      %s89 = ssub.s32 %s20, %s32
      %p90 = scmp.eq.s32.totalorder %s89, 0
      %s92 = sadd.s32 %s91, 1
      %s93 = scalar_select %p90, %s91, %s92
      %p96 = pneg %p90
      %p97 = scmp.eq.s32.totalorder %s13, 1
      %p98 = por %p96, %p97
      %p99 = scmp.ne.s32.totalorder %s91, %s94
      %p100 = scmp.eq.s32.totalorder %s13, 0
      %p101 = por %p99, %p100
      %p102 = scmp.ne.s32.totalorder %s91, %s94
      %p103 = scmp.eq.s32.totalorder %s18, 1
      %p104 = por %p102, %p103
      %p105 = scmp.ne.s32.totalorder %s94, %s95
      %p106 = scmp.eq.s32.totalorder %s18, 0
      %p107 = por %p105, %p106
      %p108 = scmp.ne.s32.totalorder %s94, %s95
      %p109 = scmp.eq.s32.totalorder %s19, 1
      %p110 = por %p108, %p109
      %p112 = scmp.ne.s32.totalorder %s95, %s111
      %p113 = scmp.eq.s32.totalorder %s19, 0
      %p114 = por %p112, %p113
      %s115 = ssub.s32 %s20, %s32
      %p116 = scmp.eq.s32.totalorder %s115, 0
      %s118 = sadd.s32 %s117, 1
      %s119 = scalar_select %p116, %s117, %s118
      %p122 = pneg %p116
      %p123 = scmp.eq.s32.totalorder %s13, 1
      %p124 = por %p122, %p123
      %p125 = scmp.ne.s32.totalorder %s117, %s120
      %p126 = scmp.eq.s32.totalorder %s13, 0
      %p127 = por %p125, %p126
      %p128 = scmp.ne.s32.totalorder %s117, %s120
      %p129 = scmp.eq.s32.totalorder %s18, 1
      %p130 = por %p128, %p129
      %p131 = scmp.ne.s32.totalorder %s120, %s121
      %p132 = scmp.eq.s32.totalorder %s18, 0
      %p133 = por %p131, %p132
      %p134 = scmp.ne.s32.totalorder %s120, %s121
      %p135 = scmp.eq.s32.totalorder %s19, 1
      %p136 = por %p134, %p135
      %p138 = scmp.ne.s32.totalorder %s121, %s137
      %p139 = scmp.eq.s32.totalorder %s19, 0
      %p140 = por %p138, %p139
      %p141 = scmp.le.s32.totalorder 1, %s13
      %p142 = scmp.lt.s32.totalorder %s13, 3
      %p143 = pnand %p141, %p142
      %p144 = pneg %p143
      // Predicated region
      $region9: #{tpu_custom_call.1} parent=5 // pred_check
        _
      $region10: #{tpu_custom_call.1} parent=5 // pred_check_branch
        %146 = sbr.rel (%p143) target = $region12
      $region11: #{tpu_custom_call.1} parent=5 // pred_region
        %s147 = ssub.s32 %s13, 1
      $region12: #{tpu_custom_call.1} parent=5 // pred_fallthru
        _
      %p148 = scmp.lt.s32.totalorder %s13, 2
      // Predicated region
      $region13: #{tpu_custom_call.1} parent=5 // pred_check
        %p149 = pneg %p148
      $region14: #{tpu_custom_call.1} parent=5 // pred_check_branch
        %151 = sbr.rel (%p149) target = $region16
      $region15: #{tpu_custom_call.1} parent=5 // pred_region
        // Predicated region
        $region17: #{tpu_custom_call.1} parent=15 // pred_check
          %p152 = pneg %p47
        $region18: #{tpu_custom_call.1} parent=15 // pred_check_branch
          %154 = sbr.rel (%p152) target = $region20
        $region19: #{tpu_custom_call.1} parent=15 // pred_region
          %s155 = sand.u32 %s37, 1
          %s156 = scalar_lea.sflag [#allocation3], %s155
          %s157 = sand.u32 %s37, 1
          %s158 = smul.addr %s157, 8
          %s159 = scalar_lea.vmem [#allocation2], %s158
          %s160 = smul.u32 2, %s21
          %162 = vsyncadd %s156, 0
          %s163 = smul.addr %s20, 2
          %s164 = sadd.s32 %s160, %s163
          %s165 = smul.addr %s164, 4
          %s166 = scalar_lea.hbm %s0, %s165
          %s168 = sshll.u32 %s166, 4
          %s169 = int_to_ptr.hbm [resolvable:$true] %s168
          %s170 = sshll.u32 %s159, 4
          %s171 = int_to_ptr.vmem [resolvable:$true] %s170
          %173 = dma.hbm_to_vmem [thread:$0]  %s169, 128, %s171, %s156
        $region20: #{tpu_custom_call.1} parent=15 // pred_fallthru
          _
        // Predicated region
        $region21: #{tpu_custom_call.1} parent=15 // pred_check
          %p174 = pneg %p75
        $region22: #{tpu_custom_call.1} parent=15 // pred_check_branch
          %176 = sbr.rel (%p174) target = $region24
        $region23: #{tpu_custom_call.1} parent=15 // pred_region
          %s177 = smul.u32 2, %s21
          %p178 = scmp.lt.s32.totalorder %s20, 1
          %s179 = scalar_select %p178, %s20, 1
          %p180 = scmp.lt.s32.totalorder %s177, 1
          %s181 = scalar_select %p180, %s177, 1
          %s182 = smul.addr %s179, 2
          %s183 = sadd.s32 %s181, %s182
          %s184 = scalar_lea.vmem %s1, %s183
          %s185 = smul.u32 2, %s21
        $region24: #{tpu_custom_call.1} parent=15 // pred_fallthru
          _
      $region16: #{tpu_custom_call.1} parent=5 // pred_fallthru
        _
      %p186 = scmp.le.s32.totalorder 1, %s13
      %p187 = scmp.lt.s32.totalorder %s13, 3
      %p188 = pnand %p186, %p187
      %p189 = pneg %p188
      // Predicated region
      $region25: #{tpu_custom_call.1} parent=5 // pred_check
        _
      $region26: #{tpu_custom_call.1} parent=5 // pred_check_branch
        %191 = sbr.rel (%p188) target = $region28
      $region27: #{tpu_custom_call.1} parent=5 // pred_region
        %s192 = ssub.s32 %s13, 1
        %s193 = sand.u32 %s40, 1
        %s194 = scalar_lea.sflag [#allocation3], %s193
        %s195 = sand.u32 %s40, 1
        %s196 = smul.addr %s195, 8
        %s197 = scalar_lea.vmem [#allocation2], %s196
        // Predicated region
        $region29: #{tpu_custom_call.1} parent=27 // pred_check
          %p198 = pneg %p53
        $region30: #{tpu_custom_call.1} parent=27 // pred_check_branch
          %200 = sbr.rel (%p198) target = $region32
        $region31: #{tpu_custom_call.1} parent=27 // pred_region
          %202 = dma.done %s194, 128
        $region32: #{tpu_custom_call.1} parent=27 // pred_fallthru
          _
        %s203 = sand.u32 %s40, 1
        %s204 = scalar_lea.sflag [#allocation3], %s203
        %s205 = sand.u32 %s40, 1
        %s206 = smul.addr %s205, 8
        %s207 = scalar_lea.vmem [#allocation2], %s206
        %p208 = pneg %p53
        %p209 = pneg %p50
        %s210 = smul.u32 2, %s23
        %p211 = scmp.lt.s32.totalorder %s22, 1
        %s212 = scalar_select %p211, %s22, 1
        %p213 = scmp.lt.s32.totalorder %s210, 1
        %s214 = scalar_select %p213, %s210, 1
        %s215 = smul.addr %s212, 2
        %s216 = sadd.s32 %s214, %s215
        %s217 = scalar_lea.vmem %s1, %s216
        %p218 = pneg %p81
        %p219 = pneg %p78
        %p220 = pneg %p107
        %p221 = pneg %p104
        %p222 = scmp.lt.s32.totalorder %s22, 1
        %s223 = scalar_select %p222, %s22, 1
        %s224 = smul.addr %s223, 4
        %s225 = scalar_lea.vmem %s2, %s224
        %p226 = pneg %p133
        %p227 = pneg %p130
        %p228 = scmp.lt.s32.totalorder %s22, 1
        %s229 = scalar_select %p228, %s22, 1
        %s230 = smul.addr %s229, 4
        %s231 = scalar_lea.vmem %s3, %s230
        %s232 = smul.u32 2, %s23
        %s233 = smul.u32 2, %s23
        %p234 = scmp.lt.s32.totalorder %s22, 1
        %s235 = scalar_select %p234, %s22, 1
        %p236 = scmp.lt.s32.totalorder %s233, 1
        %s237 = scalar_select %p236, %s233, 1
        %s238 = smul.addr %s235, 2
        %s239 = sadd.s32 %s237, %s238
        %s240 = scalar_lea.vmem %s1, %s239
        %s241 = smul.u32 2, %s23
        %p242 = scmp.lt.s32.totalorder %s22, 1
        %s243 = scalar_select %p242, %s22, 1
        %s244 = smul.addr %s243, 4
        %s245 = scalar_lea.vmem %s2, %s244
        %p246 = scmp.lt.s32.totalorder %s22, 1
        %s247 = scalar_select %p246, %s22, 1
        %s248 = smul.addr %s247, 4
        %s249 = scalar_lea.vmem %s3, %s248
        %p250 = scmp.eq.s32.totalorder %s23, 0
        // Predicated region
        $region33: #{tpu_custom_call.1} parent=27 // pred_check
          %p251 = pneg %p250
        $region34: #{tpu_custom_call.1} parent=27 // pred_check_branch
          %253 = sbr.rel (%p251) target = $region36
        $region35: #{tpu_custom_call.1} parent=27 // pred_region
          %vm254 = vcmask 3072
          %255 = vst.msk [vmem:[%s245] sm:$0xf] %vm254, 0.0
          %256 = vst.msk [vmem:[%s249] sm:$0xf] %vm254, 0.0
        $region36: #{tpu_custom_call.1} parent=27 // pred_fallthru
          _
        %v257 = vld [vmem:[%s197] sm:$0xff]
        %v258 = vld [vmem:[%s240] sm:$0x3]
        %v259 = vunpack.c.0.s8 %v258
        %261 = vst [vmem:[#allocation1] ss:$2 sm:$0xff] %v257
        %v262 = vld.sshfl [vmem:[#allocation1] sm:$0xff pattern:$0x75316420]
        %v263 = vld.sshfl [vmem:[#allocation1 + $0x8] sm:$0xff pattern:$0x75316420]
        %vm266 = vcmask 1043456
        %v267 = vsel %vm266, %v262, -inf
        %v268 = vrot.slane %v267, 4
        %v269 = vmax.f32 %v267, %v268
        %v270 = vrot.slane %v269, 2
        %v271 = vmax.f32 %v269, %v270
        %v272 = vrot.slane %v271, 1
        %v273 = vmax.f32 %v271, %v272
        %v274 = vsel %vm266, %v263, -inf
        %v275 = vrot.slane %v274, 4
        %v276 = vmax.f32 %v274, %v275
        %v277 = vrot.slane %v276, 2
        %v278 = vmax.f32 %v276, %v277
        %v279 = vrot.slane %v278, 1
        %v280 = vmax.f32 %v278, %v279
        %v283 = vrot.slane %v280, 4
        %v284 = vsel %vm266, %v273, %v283
        %v286 = vsub.f32 %v257, %v284
        %v287 = vmul.f32 %v286, 1.442695
        %v288 = vpow.pop %v287
        %290 = vst [vmem:[#allocation1] ss:$2 sm:$0xff] %v288
        %v291 = vld.sshfl [vmem:[#allocation1] sm:$0xff pattern:$0x75316420]
        %v292 = vld.sshfl [vmem:[#allocation1 + $0x8] sm:$0xff pattern:$0x75316420]
        %v295 = vsel %vm266, %v291, 0.0
        %v296 = vrot.slane %v295, 4
        %v297 = vadd.f32 %v295, %v296
        %v298 = vrot.slane %v297, 2
        %v299 = vadd.f32 %v297, %v298
        %v300 = vrot.slane %v299, 1
        %v301 = vadd.f32 %v299, %v300
        %v302 = vsel %vm266, %v292, 0.0
        %v303 = vrot.slane %v302, 4
        %v304 = vadd.f32 %v302, %v303
        %v305 = vrot.slane %v304, 2
        %v306 = vadd.f32 %v304, %v305
        %v307 = vrot.slane %v306, 1
        %v308 = vadd.f32 %v306, %v307
        %v309 = vrcp.pop %v301
        %v310 = vmul.f32 %v301, %v309
        %v311 = vsub.f32 1.0, %v310
        %v312 = vmul.f32 %v309, %v311
        %v313 = vadd.f32 %v309, %v312
        %vm314 = vweird.f32 %v301
        %vm315 = vweird.f32 %v309
        %vm316 = vmor %vm314, %vm315
        %v317 = vsel %vm316, %v309, %v313
        %v318 = vand.u32 2147483647, %v301
        %vm319 = vcmp.eq.f32.partialorder %v318, 8.507059e+37
        %v320 = vand.u32 %v301, 2147483648
        %v321 = vor.u32 1.1754944e-38, %v320
        %v322 = vsel %vm319, %v321, %v317
        %v323 = vrcp.pop %v308
        %v324 = vmul.f32 %v308, %v323
        %v325 = vsub.f32 1.0, %v324
        %v326 = vmul.f32 %v323, %v325
        %v327 = vadd.f32 %v323, %v326
        %vm328 = vweird.f32 %v308
        %vm329 = vweird.f32 %v323
        %vm330 = vmor %vm328, %vm329
        %v331 = vsel %vm330, %v323, %v327
        %v332 = vand.u32 2147483647, %v308
        %vm333 = vcmp.eq.f32.partialorder %v332, 8.507059e+37
        %v334 = vand.u32 %v308, 2147483648
        %v335 = vor.u32 1.1754944e-38, %v334
        %v336 = vsel %vm333, %v335, %v331
        %v339 = vrot.slane %v336, 4
        %v340 = vsel %vm266, %v322, %v339
        %v342 = vmul.f32 %v288, %v340
        %v343 = vlaneseq
        %v344 = vshrl.u32 %v343, 7
        %v345 = vperm.slane %v259, 0
        %v346 = vperm.slane %v259, 4
        %v347 = vperm.slane %v345, 0
        %v348 = vperm.slane %v346, 0
        %vm349 = vcmp.eq.s32.totalorder %v344, %v347
        %vm350 = vcmp.eq.s32.totalorder %v344, %v348
        %v351 = vsel %vm349, 1, 0
        %v352 = vsel %vm350, 1, 0
        %v353 = vcvt.s32.f32 %v351
        %v354 = vcvt.s32.f32 %v352
        %v357 = vrot.slane %v354, 4
        %v358 = vsel %vm266, %v353, %v357
        %v360 = vmul.f32 %v342, %v358
        %362 = vst [vmem:[#allocation1] ss:$2 sm:$0xff] %v360
        %v363 = vld.sshfl [vmem:[#allocation1] sm:$0xff pattern:$0x75316420]
        %v364 = vld.sshfl [vmem:[#allocation1 + $0x8] sm:$0xff pattern:$0x75316420]
        %v367 = vsel %vm266, %v363, 0.0
        %v368 = vsel %vm266, %v364, 0.0
        %v369 = vadd.f32 %v367, %v368
        %370 = vadd.xlane.f32.xlu0 %v369
        %v371 = vpop.xlane.xlu0 %370
        %v372 = vadd.f32 %v342, %v358
        %374 = vst [vmem:[#allocation1] ss:$2 sm:$0xff] %v372
        %v375 = vld.sshfl [vmem:[#allocation1] sm:$0xff pattern:$0x75316420]
        %v376 = vld.sshfl [vmem:[#allocation1 + $0x8] sm:$0xff pattern:$0x75316420]
        %v379 = vsel %vm266, %v375, 0.0
        %v380 = vsel %vm266, %v376, 0.0
        %v381 = vadd.f32 %v379, %v380
        %382 = vadd.xlane.f32.xlu0 %v381
        %v383 = vpop.xlane.xlu0 %382
        %v384 = vld [vmem:[%s245] sm:$0xf]
        %v385 = vadd.f32 %v384, %v371
        %vm386 = vcmask 3072
        %387 = vst.msk [vmem:[%s245] sm:$0xf] %vm386, %v385
        %v388 = vld [vmem:[%s249] sm:$0xf]
        %v389 = vadd.f32 %v388, %v383
        %390 = vst.msk [vmem:[%s249] sm:$0xf] %vm386, %v389
        %p391 = scmp.lt.s32.totalorder %s22, 1
        %s392 = scalar_select %p391, %s22, 1
        %s393 = smul.addr %s392, 4
        %s394 = scalar_lea.vmem %s2, %s393
        %p395 = scmp.lt.s32.totalorder %s22, 1
        %s396 = scalar_select %p395, %s22, 1
        %s397 = smul.addr %s396, 4
        %s398 = scalar_lea.vmem %s3, %s397
        // Predicated region
        $region37: #{tpu_custom_call.1} parent=27 // pred_check
          %p399 = pneg %p104
        $region38: #{tpu_custom_call.1} parent=27 // pred_check_branch
          %401 = sbr.rel (%p399) target = $region40
        $region39: #{tpu_custom_call.1} parent=27 // pred_region
          _
        $region40: #{tpu_custom_call.1} parent=27 // pred_fallthru
          _
        // Predicated region
        $region41: #{tpu_custom_call.1} parent=27 // pred_check
          %p402 = pneg %p130
        $region42: #{tpu_custom_call.1} parent=27 // pred_check_branch
          %404 = sbr.rel (%p402) target = $region44
        $region43: #{tpu_custom_call.1} parent=27 // pred_region
          _
        $region44: #{tpu_custom_call.1} parent=27 // pred_fallthru
          _
      $region28: #{tpu_custom_call.1} parent=5 // pred_fallthru
        _
      %p405 = scmp.le.s32.totalorder 2, %s13
      // Predicated region
      $region45: #{tpu_custom_call.1} parent=5 // pred_check
        %p406 = pneg %p405
      $region46: #{tpu_custom_call.1} parent=5 // pred_check_branch
        %408 = sbr.rel (%p406) target = $region48
      $region47: #{tpu_custom_call.1} parent=5 // pred_region
        %s409 = ssub.s32 %s13, 2
        // Predicated region
        $region49: #{tpu_custom_call.1} parent=47 // pred_check
          %p410 = pneg %p110
        $region50: #{tpu_custom_call.1} parent=47 // pred_check_branch
          %412 = sbr.rel (%p410) target = $region52
        $region51: #{tpu_custom_call.1} parent=47 // pred_region
          %p413 = scmp.lt.s32.totalorder %s24, 1
          %s414 = scalar_select %p413, %s24, 1
          %s415 = smul.addr %s414, 4
          %s416 = scalar_lea.vmem %s2, %s415
        $region52: #{tpu_custom_call.1} parent=47 // pred_fallthru
          _
        // Predicated region
        $region53: #{tpu_custom_call.1} parent=47 // pred_check
          %p417 = pneg %p136
        $region54: #{tpu_custom_call.1} parent=47 // pred_check_branch
          %419 = sbr.rel (%p417) target = $region56
        $region55: #{tpu_custom_call.1} parent=47 // pred_region
          %p420 = scmp.lt.s32.totalorder %s24, 1
          %s421 = scalar_select %p420, %s24, 1
          %s422 = smul.addr %s421, 4
          %s423 = scalar_lea.vmem %s3, %s422
        $region56: #{tpu_custom_call.1} parent=47 // pred_fallthru
          _
      $region48: #{tpu_custom_call.1} parent=5 // pred_fallthru
        _
    $region6: #{tpu_custom_call.1} parent=1 // loop_footer
      %s17 = sadd.s32 1, %s13
    $region7: #{tpu_custom_call.1} parent=1 // loop_footer_branch
      %12 = sbr.rel target = $region3
    $region8: #{tpu_custom_call.1} parent=1 // loop_exit
      _
    %424 = vsyncpa [#allocation3], 1
    %s425 = scalar_lea.sflag [#allocation3], 1
    %426 = vsyncpa %s425, 1

</llo_original>
